<compile_context>
chip_gen: v7x
topology: tpu7x:2x2x1
jax: 0.10.0
libtpu: 0.0.40
codegen_flags: <defaults>
</compile_context>

<pallas_src>
import jax
import jax.numpy as jnp
from jax.experimental import pallas as pl
from jax.experimental.pallas import tpu as pltpu

LANE = 128
BF16_SUBLANE = 16            # bf16 packs 16 rows per sublane group
SMALL_BATCH_BYPASS = 64


def _round_up(x, m):
    return ((x + m - 1) // m) * m


def _tpu_budget():
    """(vmem_limit_bytes, max_batch_tile) per TPU generation, safe fallback."""
    try:
        cap = getattr(pltpu.get_tpu_info(), "vmem_capacity_bytes", None)
    except Exception:
        cap = None
    if cap is not None and cap >= 96 * 1024 * 1024:        # v5e / v6e: 128 MiB VMEM
        return 64 * 1024 * 1024, 1024
    return 32 * 1024 * 1024, 512                           # v7x (64 MiB) / unknown


def _choose_batch_tile(b_rows, max_tb):
    # >= 4 grid steps so v7x's two TensorCores and BlockSpec double-buffering
    # actually engage, while bounding batch-padding waste to < one tile.
    steps = max(4, pl.cdiv(b_rows, max_tb))
    tb = _round_up(pl.cdiv(b_rows, steps), BF16_SUBLANE)
    return max(BF16_SUBLANE, min(tb, max_tb))


def policy_kernel(s_ref, e_ref, ws_ref, we_ref, w1_ref, b1_ref, w2_ref, b2_ref,
                  o_ref):
    # output = tanh(cat(state, o_emb) @ W_out2)   (concat folded into two dots)
    acc = jnp.dot(s_ref[...], ws_ref[...], preferred_element_type=jnp.float32)
    acc = acc + jnp.dot(e_ref[...], we_ref[...],
                        preferred_element_type=jnp.float32)
    h = jnp.tanh(acc).astype(w1_ref.dtype)
    # x = relu(l1(output))
    h1 = jnp.dot(h, w1_ref[...], preferred_element_type=jnp.float32) + b1_ref[...]
    h1 = jnp.maximum(h1, 0.0).astype(w2_ref.dtype)
    # x = sigmoid(l2(x)) -- sigmoid via tanh keeps the epilogue on the EUP.
    logits = (jnp.dot(h1, w2_ref[...], preferred_element_type=jnp.float32)
              + b2_ref[...])
    o_ref[...] = (0.5 * (jnp.tanh(0.5 * logits) + 1.0)).astype(o_ref.dtype)


def prepare_params(params, state_dim):
    """Split / cast / pad torch-Linear-style params for the fused kernel.

    params (all stored (in, out) / (out,), float32):
      w_out2 (state_dim+emb_dim, hidden1)            -- linear_out_2 (no bias)
      w1 (hidden1, hidden2), b1 (hidden2,)           -- l1
      w2 (hidden2, action_dim), b2 (action_dim,)     -- l2
    """
    w_out2, w1, b1, w2, b2 = params
    action_dim = w2.shape[1]
    ap = _round_up(action_dim, LANE)                 # lane-dense output store

    ws = w_out2[:state_dim].astype(jnp.bfloat16)     # (state_dim, h1)
    we = w_out2[state_dim:].astype(jnp.bfloat16)     # (emb_dim,  h1)
    w1b = w1.astype(jnp.bfloat16)
    b1b = b1.reshape(1, -1).astype(jnp.float32)      # biases stay f32 (added post-acc)
    w2b = jnp.zeros((w2.shape[0], ap), jnp.bfloat16).at[:, :action_dim].set(
        w2.astype(jnp.bfloat16))
    b2b = jnp.zeros((1, ap), jnp.float32).at[0, :action_dim].set(b2)
    return dict(ws=ws, we=we, w1=w1b, b1=b1b, w2=w2b, b2=b2b,
                action_dim=action_dim)


def policy_forward(state, o_emb, prep, *, force_pallas=False):
    """state: (B, state_dim), o_emb: (B, emb_dim) -> (B, action_dim) bf16."""
    ws, we, w1, b1, w2, b2 = (prep["ws"], prep["we"], prep["w1"], prep["b1"],
                              prep["w2"], prep["b2"])
    action_dim = prep["action_dim"]
    b_rows = state.shape[0]
    d_state, h1_dim = ws.shape
    d_emb = we.shape[0]
    h2_dim = w1.shape[1]
    ap = w2.shape[1]

    s = state.astype(jnp.bfloat16)
    e = o_emb.astype(jnp.bfloat16)

    if b_rows < SMALL_BATCH_BYPASS and not force_pallas:
        # Tiny batches are pure pallas_call launch overhead; fused XLA wins.
        acc = (jnp.dot(s, ws, preferred_element_type=jnp.float32)
               + jnp.dot(e, we, preferred_element_type=jnp.float32))
        h = jnp.tanh(acc).astype(jnp.bfloat16)
        hh = jnp.maximum(
            jnp.dot(h, w1, preferred_element_type=jnp.float32) + b1, 0.0
        ).astype(jnp.bfloat16)
        logits = jnp.dot(hh, w2, preferred_element_type=jnp.float32) + b2
        return jax.nn.sigmoid(logits[:, :action_dim]).astype(jnp.bfloat16)

    vmem_limit, max_tb = _tpu_budget()
    tb = _choose_batch_tile(b_rows, max_tb)
    bp = _round_up(b_rows, tb)
    if bp != b_rows:
        s = jnp.pad(s, ((0, bp - b_rows), (0, 0)))
        e = jnp.pad(e, ((0, bp - b_rows), (0, 0)))

    grid = (bp // tb,)
    flops = 2 * bp * ((d_state + d_emb) * h1_dim + h1_dim * h2_dim + h2_dim * ap)
    transcendentals = bp * (h1_dim + ap)
    bytes_accessed = (2 * bp * (d_state + d_emb + ap)           # bf16 act/out streams
                      + 2 * ((d_state + d_emb) * h1_dim
                             + h1_dim * h2_dim + h2_dim * ap)   # bf16 weights
                      + 4 * (h2_dim + ap))                      # f32 biases

    # TODO(synk): once hidden dims grow past toy size, mark the grid-invariant
    # weight/bias specs pl.Buffered(1) (single buffer) and pad lanes toward 256
    # for the v6e/v7x 2x256^2 MXU; irrelevant at these shapes.
    out = pl.pallas_call(
        policy_kernel,
        out_shape=jax.ShapeDtypeStruct((bp, ap), jnp.bfloat16),
        grid_spec=pltpu.PrefetchScalarGridSpec(
            num_scalar_prefetch=0,
            grid=grid,
            in_specs=[
                pl.BlockSpec((tb, d_state), lambda i: (i, 0)),   # batch-blocked
                pl.BlockSpec((tb, d_emb), lambda i: (i, 0)),
                pl.BlockSpec((d_state, h1_dim), lambda i: (0, 0)),  # resident
                pl.BlockSpec((d_emb, h1_dim), lambda i: (0, 0)),
                pl.BlockSpec((h1_dim, h2_dim), lambda i: (0, 0)),
                pl.BlockSpec((1, h2_dim), lambda i: (0, 0)),
                pl.BlockSpec((h2_dim, ap), lambda i: (0, 0)),
                pl.BlockSpec((1, ap), lambda i: (0, 0)),
            ],
            out_specs=pl.BlockSpec((tb, ap), lambda i: (i, 0)),
        ),
        compiler_params=pltpu.CompilerParams(
            dimension_semantics=("parallel",),       # megacore split on v7x
            vmem_limit_bytes=vmem_limit,
        ),
        cost_estimate=pl.CostEstimate(
            flops=flops,
            transcendentals=transcendentals,
            bytes_accessed=bytes_accessed,
        ),
    )(s, e, ws, we, w1, b1, w2, b2)

    # Padded lanes hold sigmoid(0)=0.5 and padded rows are garbage-free zeros'
    # sigmoid; both are sliced off here.  Consumers that can handle the padded
    # lane-dense buffer may take `out` directly and skip this pass.
    return out[:b_rows, :action_dim]


def init_params(key, state_dim, emb_dim, hidden1, hidden2, action_dim):
    """Deterministic synthetic params, torch-Linear style init, stored (in, out)."""
    ks = jax.random.split(key, 5)

    def unif(k, shape, fan_in):
        bound = 1.0 / jnp.sqrt(fan_in)
        return jax.random.uniform(k, shape, jnp.float32, -bound, bound)

    d_comb = state_dim + emb_dim
    w_out2 = unif(ks[0], (d_comb, hidden1), d_comb)   # linear_out_2 (bias=False)
    w1 = unif(ks[1], (hidden1, hidden2), hidden1)     # l1
    b1 = unif(ks[2], (hidden2,), hidden1)
    w2 = unif(ks[3], (hidden2, action_dim), hidden2)  # l2
    b2 = unif(ks[4], (action_dim,), hidden2)
    return (w_out2, w1, b1, w2, b2)


def policy_reference(state, o_emb, params):
    w_out2, w1, b1, w2, b2 = params
    combined = jnp.concatenate([state, o_emb], axis=1)
    h = jnp.tanh(combined @ w_out2)
    h1 = jax.nn.relu(h @ w1 + b1)
    return jax.nn.sigmoid(h1 @ w2 + b2)


if __name__ == "__main__":
    state_dim, emb_dim, hidden1, hidden2, action_dim = 8, 24, 32, 32, 4

    key = jax.random.PRNGKey(0)
    k_params, k_small, k_big = jax.random.split(key, 3)
    params = init_params(k_params, state_dim, emb_dim, hidden1, hidden2, action_dim)
    prep = prepare_params(params, state_dim)

    # Case 1: module-sized batch (B=2), forced through the Pallas kernel.
    k1, k2 = jax.random.split(k_small)
    state2 = jax.random.normal(k1, (2, state_dim), jnp.float32)
    emb2 = jax.random.normal(k2, (2, emb_dim), jnp.float32)
    out2 = jax.block_until_ready(policy_forward(state2, emb2, prep, force_pallas=True))
    ref2 = policy_reference(state2, emb2, params)
    assert out2.shape == (2, action_dim)
    assert jnp.allclose(out2.astype(jnp.float32), ref2, atol=3e-2, rtol=3e-2)

    # Case 2: non-tile-aligned batch through the default tiled kernel path
    # (exercises batch padding + multi-step grid).
    k3, k4 = jax.random.split(k_big)
    state_b = jax.random.normal(k3, (300, state_dim), jnp.float32)
    emb_b = jax.random.normal(k4, (300, emb_dim), jnp.float32)
    out_b = jax.block_until_ready(policy_forward(state_b, emb_b, prep))
    ref_b = policy_reference(state_b, emb_b, params)
    assert out_b.shape == (300, action_dim)
    assert jnp.allclose(out_b.astype(jnp.float32), ref_b, atol=3e-2, rtol=3e-2)

    # Case 3: tiny-batch XLA bypass path.
    out_bp = jax.block_until_ready(policy_forward(state2, emb2, prep))
    assert out_bp.shape == (2, action_dim)
    assert jnp.allclose(out_bp.astype(jnp.float32), ref2, atol=3e-2, rtol=3e-2)

    print("KERNEL_OK")
</pallas_src>

<mosaic_0001>
module attributes {stable_mosaic.version = 11 : i64} {
  func.func @policy_kernel(%arg0: i32, %arg1: memref<16x8xbf16, #tpu.memory_space<vmem>>, %arg2: memref<16x24xbf16, #tpu.memory_space<vmem>>, %arg3: memref<8x32xbf16, #tpu.memory_space<vmem>>, %arg4: memref<24x32xbf16, #tpu.memory_space<vmem>>, %arg5: memref<32x32xbf16, #tpu.memory_space<vmem>>, %arg6: memref<1x32xf32, #tpu.memory_space<vmem>>, %arg7: memref<32x128xbf16, #tpu.memory_space<vmem>>, %arg8: memref<1x128xf32, #tpu.memory_space<vmem>>, %arg9: memref<16x128xbf16, #tpu.memory_space<vmem>>) attributes {dimension_semantics = [#tpu.dimension_semantics<parallel>], iteration_bounds = array<i64: 1>, scalar_prefetch = 0 : i64, scratch_operands = 0 : i64, tpu.core_type = #tpu.core_type<tc>, window_params = [{transform_indices = @transform_0, window_bounds = array<i64: 16, 8>}, {transform_indices = @transform_1, window_bounds = array<i64: 16, 24>}, {pipeline_mode = #tpu.pipeline_mode<synchronous>, transform_indices = @transform_2, window_bounds = array<i64: 8, 32>}, {pipeline_mode = #tpu.pipeline_mode<synchronous>, transform_indices = @transform_3, window_bounds = array<i64: 24, 32>}, {pipeline_mode = #tpu.pipeline_mode<synchronous>, transform_indices = @transform_4, window_bounds = array<i64: 32, 32>}, {pipeline_mode = #tpu.pipeline_mode<synchronous>, transform_indices = @transform_5, window_bounds = array<i64: 1, 32>}, {pipeline_mode = #tpu.pipeline_mode<synchronous>, transform_indices = @transform_6, window_bounds = array<i64: 32, 128>}, {pipeline_mode = #tpu.pipeline_mode<synchronous>, transform_indices = @transform_7, window_bounds = array<i64: 1, 128>}, {transform_indices = @transform_8, window_bounds = array<i64: 16, 128>}]} {
    %c0 = arith.constant 0 : index
    %c0_0 = arith.constant 0 : index
    %0 = vector.load %arg1[%c0, %c0_0] : memref<16x8xbf16, #tpu.memory_space<vmem>>, vector<16x8xbf16>
    %c0_1 = arith.constant 0 : index
    %c0_2 = arith.constant 0 : index
    %1 = vector.load %arg3[%c0_1, %c0_2] : memref<8x32xbf16, #tpu.memory_space<vmem>>, vector<8x32xbf16>
    %cst = arith.constant dense<0.000000e+00> : vector<16x32xf32>
    %2 = tpu.matmul %0, %1, %cst {dimension_numbers = #tpu.dot_dimension_numbers<[1], [0], [0], [1], [0, 0, 1, 1], [], []>} : vector<16x8xbf16>, vector<8x32xbf16>, vector<16x32xf32> -> vector<16x32xf32>
    %c0_3 = arith.constant 0 : index
    %c0_4 = arith.constant 0 : index
    %3 = vector.load %arg2[%c0_3, %c0_4] : memref<16x24xbf16, #tpu.memory_space<vmem>>, vector<16x24xbf16>
    %c0_5 = arith.constant 0 : index
    %c0_6 = arith.constant 0 : index
    %4 = vector.load %arg4[%c0_5, %c0_6] : memref<24x32xbf16, #tpu.memory_space<vmem>>, vector<24x32xbf16>
    %cst_7 = arith.constant dense<0.000000e+00> : vector<16x32xf32>
    %5 = tpu.matmul %3, %4, %cst_7 {dimension_numbers = #tpu.dot_dimension_numbers<[1], [0], [0], [1], [0, 0, 1, 1], [], []>} : vector<16x24xbf16>, vector<24x32xbf16>, vector<16x32xf32> -> vector<16x32xf32>
    %6 = arith.addf %2, %5 : vector<16x32xf32>
    %7 = math.tanh %6 : vector<16x32xf32>
    %8 = arith.truncf %7 : vector<16x32xf32> to vector<16x32xbf16>
    %c0_8 = arith.constant 0 : index
    %c0_9 = arith.constant 0 : index
    %9 = vector.load %arg5[%c0_8, %c0_9] : memref<32x32xbf16, #tpu.memory_space<vmem>>, vector<32x32xbf16>
    %cst_10 = arith.constant dense<0.000000e+00> : vector<16x32xf32>
    %10 = tpu.matmul %8, %9, %cst_10 {dimension_numbers = #tpu.dot_dimension_numbers<[1], [0], [0], [1], [0, 0, 1, 1], [], []>} : vector<16x32xbf16>, vector<32x32xbf16>, vector<16x32xf32> -> vector<16x32xf32>
    %c0_11 = arith.constant 0 : index
    %c0_12 = arith.constant 0 : index
    %11 = vector.load %arg6[%c0_11, %c0_12] : memref<1x32xf32, #tpu.memory_space<vmem>>, vector<1x32xf32>
    %12 = vector.broadcast %11 : vector<1x32xf32> to vector<16x32xf32>
    %13 = arith.addf %10, %12 : vector<16x32xf32>
    %cst_13 = arith.constant 0.000000e+00 : f32
    %14 = vector.broadcast %cst_13 : f32 to vector<16x32xf32>
    %15 = arith.maximumf %13, %14 : vector<16x32xf32>
    %16 = arith.truncf %15 : vector<16x32xf32> to vector<16x32xbf16>
    %c0_14 = arith.constant 0 : index
    %c0_15 = arith.constant 0 : index
    %17 = vector.load %arg7[%c0_14, %c0_15] : memref<32x128xbf16, #tpu.memory_space<vmem>>, vector<32x128xbf16>
    %cst_16 = arith.constant dense<0.000000e+00> : vector<16x128xf32>
    %18 = tpu.matmul %16, %17, %cst_16 {dimension_numbers = #tpu.dot_dimension_numbers<[1], [0], [0], [1], [0, 0, 1, 1], [], []>} : vector<16x32xbf16>, vector<32x128xbf16>, vector<16x128xf32> -> vector<16x128xf32>
    %c0_17 = arith.constant 0 : index
    %c0_18 = arith.constant 0 : index
    %19 = vector.load %arg8[%c0_17, %c0_18] : memref<1x128xf32, #tpu.memory_space<vmem>>, vector<1x128xf32>
    %20 = vector.broadcast %19 : vector<1x128xf32> to vector<16x128xf32>
    %21 = arith.addf %18, %20 : vector<16x128xf32>
    %cst_19 = arith.constant 5.000000e-01 : f32
    %22 = vector.broadcast %cst_19 : f32 to vector<16x128xf32>
    %23 = arith.mulf %22, %21 : vector<16x128xf32>
    %24 = math.tanh %23 : vector<16x128xf32>
    %cst_20 = arith.constant 1.000000e+00 : f32
    %25 = vector.broadcast %cst_20 : f32 to vector<16x128xf32>
    %26 = arith.addf %24, %25 : vector<16x128xf32>
    %cst_21 = arith.constant 5.000000e-01 : f32
    %27 = vector.broadcast %cst_21 : f32 to vector<16x128xf32>
    %28 = arith.mulf %27, %26 : vector<16x128xf32>
    %29 = arith.truncf %28 : vector<16x128xf32> to vector<16x128xbf16>
    %c0_22 = arith.constant 0 : index
    %c0_23 = arith.constant 0 : index
    %30 = vector.load %arg9[%c0_22, %c0_23] : memref<16x128xbf16, #tpu.memory_space<vmem>>, vector<16x128xbf16>
    tpu.vector_store %arg9[%c0_22, %c0_23], %29 {strides = array<i32>} : memref<16x128xbf16, #tpu.memory_space<vmem>>, vector<16x128xbf16>,
    return
  }
  func.func @transform_0(%arg0: i32) -> (i32, i32) {
    %c0_i32 = arith.constant 0 : i32
    %c0_i32_0 = arith.constant 0 : i32
    return %arg0, %c0_i32 : i32, i32
  }
  func.func @transform_1(%arg0: i32) -> (i32, i32) {
    %c0_i32 = arith.constant 0 : i32
    %c0_i32_0 = arith.constant 0 : i32
    return %arg0, %c0_i32 : i32, i32
  }
  func.func @transform_2(%arg0: i32) -> (i32, i32) {
    %c0_i32 = arith.constant 0 : i32
    %c0_i32_0 = arith.constant 0 : i32
    %c0_i32_1 = arith.constant 0 : i32
    return %c0_i32, %c0_i32_0 : i32, i32
  }
  func.func @transform_3(%arg0: i32) -> (i32, i32) {
    %c0_i32 = arith.constant 0 : i32
    %c0_i32_0 = arith.constant 0 : i32
    %c0_i32_1 = arith.constant 0 : i32
    return %c0_i32, %c0_i32_0 : i32, i32
  }
  func.func @transform_4(%arg0: i32) -> (i32, i32) {
    %c0_i32 = arith.constant 0 : i32
    %c0_i32_0 = arith.constant 0 : i32
    %c0_i32_1 = arith.constant 0 : i32
    return %c0_i32, %c0_i32_0 : i32, i32
  }
  func.func @transform_5(%arg0: i32) -> (i32, i32) {
    %c0_i32 = arith.constant 0 : i32
    %c0_i32_0 = arith.constant 0 : i32
    %c0_i32_1 = arith.constant 0 : i32
    return %c0_i32, %c0_i32_0 : i32, i32
  }
  func.func @transform_6(%arg0: i32) -> (i32, i32) {
    %c0_i32 = arith.constant 0 : i32
    %c0_i32_0 = arith.constant 0 : i32
    %c0_i32_1 = arith.constant 0 : i32
    return %c0_i32, %c0_i32_0 : i32, i32
  }
  func.func @transform_7(%arg0: i32) -> (i32, i32) {
    %c0_i32 = arith.constant 0 : i32
    %c0_i32_0 = arith.constant 0 : i32
    %c0_i32_1 = arith.constant 0 : i32
    return %c0_i32, %c0_i32_0 : i32, i32
  }
  func.func @transform_8(%arg0: i32) -> (i32, i32) {
    %c0_i32 = arith.constant 0 : i32
    %c0_i32_0 = arith.constant 0 : i32
    return %arg0, %c0_i32 : i32, i32
  }
}

</mosaic_0001>

<llo_original>
// kernel: tpu_custom_call.1
$region0: #{tpu_custom_call.1}
  #allocation0 [shape = 'u32[]', space=smem, size = 0x4, offset = 0x4, fixed_abs, tag = 'smem constant byte address 0x4 - core index']
  #allocation1 [shape = 'u32[144,128]{1,0:T(1,128)}', space=vmem, size = 0x12000, scoped, tag = 'internal scratch']
  %s0 = inlined_call_operand.vmem [shape: bf16[16,8], index: 0, kind: input, shape index: {}]
  %s1 = inlined_call_operand.hbm [shape: bf16[16,24], index: 1, kind: input, shape index: {}]
  %s2 = inlined_call_operand.hbm [shape: bf16[8,32], index: 2, kind: input, shape index: {}]
  %s3 = inlined_call_operand.hbm [shape: bf16[24,32], index: 3, kind: input, shape index: {}]
  %s4 = inlined_call_operand.vmem [shape: bf16[32,32], index: 4, kind: input, shape index: {}]
  %s5 = inlined_call_operand.vmem [shape: f32[1,32], index: 5, kind: input, shape index: {}]
  %s6 = inlined_call_operand.vmem [shape: bf16[32,128], index: 6, kind: input, shape index: {}]
  %s7 = inlined_call_operand.vmem [shape: f32[1,128], index: 7, kind: input, shape index: {}]
  %s8 = inlined_call_operand.hbm [shape: bf16[16,128], index: 8, kind: output, shape index: {}]
  %s9 = sld [smem:[#allocation0]]
  $region54: #{tpu_custom_call.1} parent=0
    _
  %s11 = ssub.s32 1, %s9
  %s12 = scalar_select 0, %s11, %s9
  $region1: #{tpu_custom_call.1} parent=0
    #allocation2 [shape = 'u8[4096]{0}', space=vmem, size = 0x1000, scoped, tag = 'input window, operand 1, single buffered']
    #allocation3 [shape = 's32[1]{0}', space=sflag, size = 0x4, scoped, tag = 'scoped memory for tpu_custom_call.1']
    #allocation4 [shape = 's32[1]{0}', space=sflag, size = 0x4, scoped, tag = 'scoped memory for tpu_custom_call.1']
    #allocation5 [shape = 'u8[2048]{0}', space=vmem, size = 0x800, scoped, tag = 'input window, operand 2, single buffered']
    #allocation6 [shape = 's32[1]{0}', space=sflag, size = 0x4, scoped, tag = 'scoped memory for tpu_custom_call.1']
    #allocation7 [shape = 'u8[6144]{0}', space=vmem, size = 0x1800, scoped, tag = 'input window, operand 3, single buffered']
    #allocation8 [shape = 'u8[4096]{0}', space=vmem, size = 0x1000, scoped, tag = 'output window, operand 0, single buffered']
    %13 = vsyncpa [#allocation3], 0
    %14 = vsyncpa [#allocation6], 0
    %15 = vsyncpa [#allocation4], 0
    // Predicated region
    $region2: #{tpu_custom_call.1} parent=1 // pred_check
      _
    $region3: #{tpu_custom_call.1} parent=1 // pred_check_branch
      %17 = sbr.rel (0) target = $region5
    $region4: #{tpu_custom_call.1} parent=1 // pred_region
      _
    $region5: #{tpu_custom_call.1} parent=1 // pred_fallthru
      _
    // Predicated region
    $region6: #{tpu_custom_call.1} parent=1 // pred_check
      _
    $region7: #{tpu_custom_call.1} parent=1 // pred_check_branch
      %19 = sbr.rel (0) target = $region9
    $region8: #{tpu_custom_call.1} parent=1 // pred_region
      %s21 = ssub.s32 128, 128
      %22 = vsyncadd [#allocation3], %s21
      %s23 = sshll.u32 [#allocation2], 4
      %s24 = int_to_ptr.vmem [resolvable:$true] %s23
      %29 = dma.hbm_to_vmem [thread:$0]  %s1, 128, %s24, [#allocation3], 64, 64, 4
    $region9: #{tpu_custom_call.1} parent=1 // pred_fallthru
      _
    // Predicated region
    $region10: #{tpu_custom_call.1} parent=1 // pred_check
      _
    $region11: #{tpu_custom_call.1} parent=1 // pred_check_branch
      %31 = sbr.rel (0) target = $region13
    $region12: #{tpu_custom_call.1} parent=1 // pred_region
      %s33 = ssub.s32 64, 64
      %34 = vsyncadd [#allocation6], %s33
      %s36 = sshll.u32 [#allocation5], 4
      %s37 = int_to_ptr.vmem [resolvable:$true] %s36
      %39 = dma.hbm_to_vmem [thread:$0]  %s2, 64, %s37, [#allocation6]
    $region13: #{tpu_custom_call.1} parent=1 // pred_fallthru
      _
    // Predicated region
    $region14: #{tpu_custom_call.1} parent=1 // pred_check
      _
    $region15: #{tpu_custom_call.1} parent=1 // pred_check_branch
      %41 = sbr.rel (0) target = $region17
    $region16: #{tpu_custom_call.1} parent=1 // pred_region
      %s43 = ssub.s32 192, 192
      %44 = vsyncadd [#allocation6], %s43
      %s45 = sshll.u32 [#allocation7], 4
      %s46 = int_to_ptr.vmem [resolvable:$true] %s45
      %51 = dma.hbm_to_vmem [thread:$0]  %s3, 192, %s46, [#allocation6], 64, 64, 4
    $region17: #{tpu_custom_call.1} parent=1 // pred_fallthru
      _
    // Predicated region
    $region18: #{tpu_custom_call.1} parent=1 // pred_check
      _
    $region19: #{tpu_custom_call.1} parent=1 // pred_check_branch
      %53 = sbr.rel (0) target = $region21
    $region20: #{tpu_custom_call.1} parent=1 // pred_region
      _
    $region21: #{tpu_custom_call.1} parent=1 // pred_fallthru
      _
    // Predicated region
    $region22: #{tpu_custom_call.1} parent=1 // pred_check
      _
    $region23: #{tpu_custom_call.1} parent=1 // pred_check_branch
      %55 = sbr.rel (0) target = $region25
    $region24: #{tpu_custom_call.1} parent=1 // pred_region
      _
    $region25: #{tpu_custom_call.1} parent=1 // pred_fallthru
      _
    // Predicated region
    $region26: #{tpu_custom_call.1} parent=1 // pred_check
      _
    $region27: #{tpu_custom_call.1} parent=1 // pred_check_branch
      %57 = sbr.rel (0) target = $region29
    $region28: #{tpu_custom_call.1} parent=1 // pred_region
      _
    $region29: #{tpu_custom_call.1} parent=1 // pred_fallthru
      _
    // Predicated region
    $region30: #{tpu_custom_call.1} parent=1 // pred_check
      _
    $region31: #{tpu_custom_call.1} parent=1 // pred_check_branch
      %59 = sbr.rel (0) target = $region33
    $region32: #{tpu_custom_call.1} parent=1 // pred_region
      _
    $region33: #{tpu_custom_call.1} parent=1 // pred_fallthru
      _
    // Predicated region
    $region34: #{tpu_custom_call.1} parent=1 // pred_check
      _
    $region35: #{tpu_custom_call.1} parent=1 // pred_check_branch
      %61 = sbr.rel (0) target = $region37
    $region36: #{tpu_custom_call.1} parent=1 // pred_region
      %62 = dma.done [#allocation3], 128
    $region37: #{tpu_custom_call.1} parent=1 // pred_fallthru
      _
    // Predicated region
    $region38: #{tpu_custom_call.1} parent=1 // pred_check
      _
    $region39: #{tpu_custom_call.1} parent=1 // pred_check_branch
      %64 = sbr.rel (0) target = $region41
    $region40: #{tpu_custom_call.1} parent=1 // pred_region
      %65 = dma.done [#allocation6], 64
    $region41: #{tpu_custom_call.1} parent=1 // pred_fallthru
      _
    // Predicated region
    $region42: #{tpu_custom_call.1} parent=1 // pred_check
      _
    $region43: #{tpu_custom_call.1} parent=1 // pred_check_branch
      %67 = sbr.rel (0) target = $region45
    $region44: #{tpu_custom_call.1} parent=1 // pred_region
      %68 = dma.done [#allocation6], 192
    $region45: #{tpu_custom_call.1} parent=1 // pred_fallthru
      _
    %v70 = vld [vmem:[%s0] sm:$0xf]
    %v71 = vld [vmem:[%s0 + $0x4] sm:$0xf]
    %v72 = vld [vmem:[#allocation5] sm:$0xf]
    %v73 = vld [vmem:[#allocation2] sm:$0xf]
    %v74 = vld [vmem:[#allocation2 + $0x4] sm:$0xf]
    %v75 = vld [vmem:[#allocation7] sm:$0xf]
    %v76 = vld [vmem:[#allocation7 + $0x4] sm:$0xf]
    %v77 = vld [vmem:[#allocation7 + $0x8] sm:$0xf]
    %v80 = vunpack.c.l.b16 %v73
    %v81 = vunpack.c.l.b16 %v74
    %v82 = vpack.c.b16 %v81, %v80
    %v86 = vunpack.c.l.b16 %v75
    %v87 = vunpack.c.l.b16 %v76
    %v88 = vunpack.c.l.b16 %v77
    %v89 = vpack.c.b16 %v87, %v86
    %v90 = vpack.c.b16 %v88, %v88
    %vm92 = vcmask 195584
    %v94 = vsel %vm92, %v82, 0
    %vm96 = vcmask 1043456
    %v98 = vsel %vm96, %v90, 0
    %100 = vmatprep.subr.bf16.mxu0 0
    %101 = vmatpush1.bf16.msra.mxu0 %v89
    %102 = vmatprep.subr.bf16.mxu0 0
    %103 = vmatpush1.bf16.msra.mxu0 %v98
    %104 = vmatprep.subr.bf16.mxu0 0
    %105 = vmatpush1.bf16.msra.mxu0 0
    %106 = vmatprep.subr.bf16.mxu0 0
    %107 = vmatpush1.bf16.msra.mxu0 0
    %108 = vmatprep.subr.bf16.mxu0 0
    %109 = vmatpush1.bf16.msra.mxu0 0
    %110 = vmatprep.subr.bf16.mxu0 0
    %111 = vmatpush1.bf16.msra.mxu0 0
    %112 = vmatprep.subr.bf16.mxu0 0
    %113 = vmatpush1.bf16.msra.mxu0 0
    %114 = vmatprep.subr.bf16.mxu0 0
    %115 = vmatpush1.bf16.msra.mxu0 0
    %116 = vmatprep.subr.bf16.mxu0 0
    %117 = vmatpush1.bf16.msra.mxu0 0
    %118 = vmatprep.subr.bf16.mxu0 0
    %119 = vmatpush1.bf16.msra.mxu0 0
    %120 = vmatprep.subr.bf16.mxu0 0
    %121 = vmatpush1.bf16.msra.mxu0 0
    %122 = vmatprep.subr.bf16.mxu0 0
    %123 = vmatpush1.bf16.msra.mxu0 0
    %124 = vmatprep.subr.bf16.mxu0 0
    %125 = vmatpush1.bf16.msra.mxu0 0
    %126 = vmatprep.subr.bf16.mxu0 0
    %127 = vmatpush1.bf16.msra.mxu0 0
    %128 = vmatprep.subr.bf16.mxu0 0
    %129 = vmatpush1.bf16.msra.mxu0 0
    %130 = vmatprep.subr.bf16.mxu0 0
    %131 = vmatpush1.bf16.msra.mxu0 0
    %132 = vmatprep.mubr.bf16.mxu0 0
    %133 = vmatmul.mubr.bf16.gmra.mrb[0].mxu0 %v94
    %v134 = vpop.f32.mrb[0].mxu0
    %v135 = vadd.f32 0.0, %v134
    %v136 = vpop.f32.mrb[0].mxu0
    %v137 = vpop.f32.mrb[0].mxu0
    %v138 = vadd.f32 0.0, %v137
    %v139 = vpop.f32.mrb[0].mxu0
    %140 = vdwg.mxu0
    %v143 = vunpack.c.l.b16 %v70
    %v144 = vunpack.c.l.b16 %v71
    %v145 = vpack.c.b16 %v144, %v143
    %vm146 = vcmask 64512
    %v148 = vsel %vm146, %v145, 0
    %v151 = vsel %vm96, %v72, 0
    %153 = vmatprep.subr.bf16.mxu0 0
    %154 = vmatpush1.bf16.msra.mxu0 %v151
    %155 = vmatprep.subr.bf16.mxu0 0
    %156 = vmatpush1.bf16.msra.mxu0 0
    %157 = vmatprep.subr.bf16.mxu0 0
    %158 = vmatpush1.bf16.msra.mxu0 0
    %159 = vmatprep.subr.bf16.mxu0 0
    %160 = vmatpush1.bf16.msra.mxu0 0
    %161 = vmatprep.subr.bf16.mxu0 0
    %162 = vmatpush1.bf16.msra.mxu0 0
    %163 = vmatprep.subr.bf16.mxu0 0
    %164 = vmatpush1.bf16.msra.mxu0 0
    %165 = vmatprep.subr.bf16.mxu0 0
    %166 = vmatpush1.bf16.msra.mxu0 0
    %167 = vmatprep.subr.bf16.mxu0 0
    %168 = vmatpush1.bf16.msra.mxu0 0
    %169 = vmatprep.subr.bf16.mxu0 0
    %170 = vmatpush1.bf16.msra.mxu0 0
    %171 = vmatprep.subr.bf16.mxu0 0
    %172 = vmatpush1.bf16.msra.mxu0 0
    %173 = vmatprep.subr.bf16.mxu0 0
    %174 = vmatpush1.bf16.msra.mxu0 0
    %175 = vmatprep.subr.bf16.mxu0 0
    %176 = vmatpush1.bf16.msra.mxu0 0
    %177 = vmatprep.subr.bf16.mxu0 0
    %178 = vmatpush1.bf16.msra.mxu0 0
    %179 = vmatprep.subr.bf16.mxu0 0
    %180 = vmatpush1.bf16.msra.mxu0 0
    %181 = vmatprep.subr.bf16.mxu0 0
    %182 = vmatpush1.bf16.msra.mxu0 0
    %183 = vmatprep.subr.bf16.mxu0 0
    %184 = vmatpush1.bf16.msra.mxu0 0
    %185 = vmatprep.mubr.bf16.mxu0 0
    %186 = vmatmul.mubr.bf16.gmra.mrb[0].mxu0 %v148
    %v187 = vpop.f32.mrb[0].mxu0
    %v188 = vadd.f32 %v135, %v187
    %v189 = vpop.f32.mrb[0].mxu0
    %v190 = vpop.f32.mrb[0].mxu0
    %v191 = vadd.f32 %v138, %v190
    %v192 = vpop.f32.mrb[0].mxu0
    %193 = vdwg.mxu0
    %v194 = vtanh.pop %v188
    %v195 = vtanh.pop %v191
    %v196 = vpack.c.bf16 %v195, %v194
    %v197 = vld [vmem:[%s4] sm:$0xf]
    %v198 = vld [vmem:[%s4 + $0x4] sm:$0xf]
    %v199 = vld [vmem:[%s4 + $0x8] sm:$0xf]
    %v200 = vld [vmem:[%s4 + $0xc] sm:$0xf]
    %v201 = vld [vmem:[%s5] sm:$0x1]
    %v203 = vlaneseq
    %v204 = vshrl.u32 %v203, 7
    %v205 = vsub.s32 0, %v204
    %v206 = vrot.slane %v201, %v205
    %v212 = vunpack.c.l.b16 %v197
    %v213 = vunpack.c.l.b16 %v198
    %v214 = vunpack.c.l.b16 %v199
    %v215 = vunpack.c.l.b16 %v200
    %v216 = vpack.c.b16 %v213, %v212
    %v217 = vpack.c.b16 %v215, %v214
    %vm220 = vcmask 261120
    %v222 = vsel %vm220, %v196, 0
    %224 = vmatprep.subr.bf16.mxu0 0
    %225 = vmatpush1.bf16.msra.mxu0 %v216
    %226 = vmatprep.subr.bf16.mxu0 0
    %227 = vmatpush1.bf16.msra.mxu0 %v217
    %228 = vmatprep.subr.bf16.mxu0 0
    %229 = vmatpush1.bf16.msra.mxu0 0
    %230 = vmatprep.subr.bf16.mxu0 0
    %231 = vmatpush1.bf16.msra.mxu0 0
    %232 = vmatprep.subr.bf16.mxu0 0
    %233 = vmatpush1.bf16.msra.mxu0 0
    %234 = vmatprep.subr.bf16.mxu0 0
    %235 = vmatpush1.bf16.msra.mxu0 0
    %236 = vmatprep.subr.bf16.mxu0 0
    %237 = vmatpush1.bf16.msra.mxu0 0
    %238 = vmatprep.subr.bf16.mxu0 0
    %239 = vmatpush1.bf16.msra.mxu0 0
    %240 = vmatprep.subr.bf16.mxu0 0
    %241 = vmatpush1.bf16.msra.mxu0 0
    %242 = vmatprep.subr.bf16.mxu0 0
    %243 = vmatpush1.bf16.msra.mxu0 0
    %244 = vmatprep.subr.bf16.mxu0 0
    %245 = vmatpush1.bf16.msra.mxu0 0
    %246 = vmatprep.subr.bf16.mxu0 0
    %247 = vmatpush1.bf16.msra.mxu0 0
    %248 = vmatprep.subr.bf16.mxu0 0
    %249 = vmatpush1.bf16.msra.mxu0 0
    %250 = vmatprep.subr.bf16.mxu0 0
    %251 = vmatpush1.bf16.msra.mxu0 0
    %252 = vmatprep.subr.bf16.mxu0 0
    %253 = vmatpush1.bf16.msra.mxu0 0
    %254 = vmatprep.subr.bf16.mxu0 0
    %255 = vmatpush1.bf16.msra.mxu0 0
    %256 = vmatprep.mubr.bf16.mxu0 0
    %257 = vmatmul.mubr.bf16.gmra.mrb[0].mxu0 %v222
    %v258 = vpop.f32.mrb[0].mxu0
    %v259 = vadd.f32 %v206, %v258
    %v260 = vpop.f32.mrb[0].mxu0
    %v261 = vpop.f32.mrb[0].mxu0
    %v262 = vadd.f32 %v206, %v261
    %v263 = vpop.f32.mrb[0].mxu0
    %264 = vdwg.mxu0
    %v265 = vmax.f32 %v259, 0.0
    %v266 = vmax.f32 %v262, 0.0
    %v267 = vpack.c.bf16 %v266, %v265
    %v268 = vld [vmem:[%s6] sm:$0xf]
    %v269 = vld [vmem:[%s6 + $0x4] sm:$0xf]
    %v270 = vld [vmem:[%s6 + $0x8] sm:$0xf]
    %v271 = vld [vmem:[%s6 + $0xc] sm:$0xf]
    %v272 = vld [vmem:[%s7] sm:$0x1]
    %v274 = vlaneseq
    %v275 = vshrl.u32 %v274, 7
    %v276 = vsub.s32 0, %v275
    %v277 = vrot.slane %v272, %v276
    %v283 = vunpack.c.l.b16 %v268
    %v284 = vunpack.c.l.b16 %v269
    %v285 = vunpack.c.l.b16 %v270
    %v286 = vunpack.c.l.b16 %v271
    %v287 = vpack.c.b16 %v284, %v283
    %v288 = vpack.c.b16 %v286, %v285
    %v292 = vsel %vm220, %v267, 0
    %294 = vmatprep.subr.bf16.mxu0 0
    %295 = vmatpush1.bf16.msra.mxu0 %v287
    %296 = vmatprep.subr.bf16.mxu0 0
    %297 = vmatpush1.bf16.msra.mxu0 %v288
    %298 = vmatprep.subr.bf16.mxu0 0
    %299 = vmatpush1.bf16.msra.mxu0 0
    %300 = vmatprep.subr.bf16.mxu0 0
    %301 = vmatpush1.bf16.msra.mxu0 0
    %302 = vmatprep.subr.bf16.mxu0 0
    %303 = vmatpush1.bf16.msra.mxu0 0
    %304 = vmatprep.subr.bf16.mxu0 0
    %305 = vmatpush1.bf16.msra.mxu0 0
    %306 = vmatprep.subr.bf16.mxu0 0
    %307 = vmatpush1.bf16.msra.mxu0 0
    %308 = vmatprep.subr.bf16.mxu0 0
    %309 = vmatpush1.bf16.msra.mxu0 0
    %310 = vmatprep.subr.bf16.mxu0 0
    %311 = vmatpush1.bf16.msra.mxu0 0
    %312 = vmatprep.subr.bf16.mxu0 0
    %313 = vmatpush1.bf16.msra.mxu0 0
    %314 = vmatprep.subr.bf16.mxu0 0
    %315 = vmatpush1.bf16.msra.mxu0 0
    %316 = vmatprep.subr.bf16.mxu0 0
    %317 = vmatpush1.bf16.msra.mxu0 0
    %318 = vmatprep.subr.bf16.mxu0 0
    %319 = vmatpush1.bf16.msra.mxu0 0
    %320 = vmatprep.subr.bf16.mxu0 0
    %321 = vmatpush1.bf16.msra.mxu0 0
    %322 = vmatprep.subr.bf16.mxu0 0
    %323 = vmatpush1.bf16.msra.mxu0 0
    %324 = vmatprep.subr.bf16.mxu0 0
    %325 = vmatpush1.bf16.msra.mxu0 0
    %326 = vmatprep.mubr.bf16.mxu0 0
    %327 = vmatmul.mubr.bf16.gmra.mrb[0].mxu0 %v292
    %v328 = vpop.f32.mrb[0].mxu0
    %v329 = vadd.f32 %v277, %v328
    %v330 = vpop.f32.mrb[0].mxu0
    %v331 = vpop.f32.mrb[0].mxu0
    %v332 = vadd.f32 %v277, %v331
    %v333 = vpop.f32.mrb[0].mxu0
    %334 = vdwg.mxu0
    %v335 = vmul.f32 %v329, 0.5
    %v336 = vmul.f32 %v332, 0.5
    %v337 = vtanh.pop %v335
    %v338 = vtanh.pop %v336
    %v339 = vadd.f32 %v337, 1.0
    %v340 = vadd.f32 %v338, 1.0
    %v341 = vmul.f32 %v339, 0.5
    %v342 = vmul.f32 %v340, 0.5
    %v343 = vpack.c.bf16 %v342, %v341
    %v345 = vunpack.c.l.b16 %v343
    %v346 = vunpack.c.h.b16 %v343
    %v347 = vpack.c.b16 %v345, %v345
    %v348 = vpack.c.b16 %v346, %v346
    %351 = vst [vmem:[#allocation8] sm:$0xf] %v347
    %352 = vst [vmem:[#allocation8 + $0x4] sm:$0xf] %v348
    // Predicated region
    $region46: #{tpu_custom_call.1} parent=1 // pred_check
      _
    $region47: #{tpu_custom_call.1} parent=1 // pred_check_branch
      %354 = sbr.rel (0) target = $region49
    $region48: #{tpu_custom_call.1} parent=1 // pred_region
      %s356 = ssub.s32 128, 128
      %357 = vsyncadd [#allocation4], %s356
      %s358 = sshll.u32 [#allocation8], 4
      %s359 = int_to_ptr.vmem [resolvable:$true] %s358
      %364 = dma.vmem_to_hbm [thread:$0]  %s359, 128, %s8, [#allocation4], 64, 64, 4
    $region49: #{tpu_custom_call.1} parent=1 // pred_fallthru
      _
    // Predicated region
    $region50: #{tpu_custom_call.1} parent=1 // pred_check
      _
    $region51: #{tpu_custom_call.1} parent=1 // pred_check_branch
      %366 = sbr.rel (0) target = $region53
    $region52: #{tpu_custom_call.1} parent=1 // pred_region
      %367 = dma.done [#allocation4], 128
    $region53: #{tpu_custom_call.1} parent=1 // pred_fallthru
      _
    %368 = vsyncpa [#allocation3], 1
    %369 = vsyncpa [#allocation6], 1
    %370 = vsyncpa [#allocation4], 1

</llo_original>
